<compile_context>
chip_gen: v7x
topology: tpu7x:2x2x1
jax: 0.10.0
libtpu: 0.0.40
codegen_flags: <defaults>
</compile_context>

<pallas_src>
import functools

import jax
import jax.numpy as jnp
from jax import lax
from jax.experimental import pallas as pl
from jax.experimental.pallas import tpu as pltpu


def _round_up(x, m):
    return (x + m - 1) // m * m


def _vmem_capacity_bytes():
    # Trace-time HW query; fall back to v7x's 64 MiB (most restrictive gen).
    try:
        info = pltpu.get_tpu_info()
        cap = getattr(info, "vmem_capacity_bytes", None)
        if cap:
            return int(cap)
    except Exception:
        pass
    return 64 << 20


def _pick_tb(B, per_row_bytes, resident_bytes, vmem_cap, align, max_tb=2048):
    """Largest align-multiple rows/tile keeping the footprint under ~35% of
    VMEM, capped at ceil(B/2) so the 'parallel' grid axis has >= 2 tiles
    whenever the batch allows it (keeps both v7x TensorCores busy)."""
    budget = int(0.35 * vmem_cap) - resident_bytes
    tb_cap = budget // max(per_row_bytes, 1)
    tb_cap = max(align, (tb_cap // align) * align)
    tb_cap = min(tb_cap, max_tb)
    half = _round_up(max(align, -(-B // 2)), align)
    return min(tb_cap, half)


def _vmem_limit(footprint_bytes, vmem_cap):
    # Leave headroom (esp. v7x's 64 MiB physical VMEM): never request > 75%.
    hi = int(0.75 * vmem_cap)
    return min(hi, max(footprint_bytes + (8 << 20), 16 << 20))


# ----------------------------------------------------------------------------
# Path A (small tables): whole tables resident in VMEM, one-hot MXU gather
# ----------------------------------------------------------------------------
def _tables_in_vmem_kernel(ent_ref, rel_ref, obs_ids_ref, new_ids_ref,
                           rel_ids_ref, new_ref, score_ref):
    tb = new_ref.shape[0]
    E = ent_ref.shape[0]
    R = rel_ref.shape[0]

    ent = ent_ref[...].astype(jnp.float32)
    rel_tab = rel_ref[...].astype(jnp.float32)

    # One-hot matmul gather: iota / compare / MXU only (guaranteed lowering),
    # and removes the 3*tb tiny row DMAs entirely when the tables are small.
    ent_cols = lax.broadcasted_iota(jnp.int32, (tb, E), 1)
    rel_cols = lax.broadcasted_iota(jnp.int32, (tb, R), 1)
    obs_oh = (obs_ids_ref[...] == ent_cols).astype(jnp.float32)   # (tb,1)==(tb,E)
    new_oh = (new_ids_ref[...] == ent_cols).astype(jnp.float32)
    rel_oh = (rel_ids_ref[...] == rel_cols).astype(jnp.float32)

    obs = jnp.dot(obs_oh, ent, preferred_element_type=jnp.float32)
    new = jnp.dot(new_oh, ent, preferred_element_type=jnp.float32)
    rel = jnp.dot(rel_oh, rel_tab, preferred_element_type=jnp.float32)

    new_ref[...] = new.astype(new_ref.dtype)
    # cal_score: sum_d obs * new * rel  (f32 accumulate, XLU lane reduce).
    score_ref[...] = jnp.sum(obs * new * rel, axis=1, keepdims=True)


def _score_tables_in_vmem(ent_emb, rel_emb, obs_ids, new_ids, rel_ids, *,
                          tb, vmem_cap):
    B = obs_ids.shape[0]
    E, D = ent_emb.shape
    R = rel_emb.shape[0]
    emb_dtype = ent_emb.dtype
    itemsize = jnp.dtype(emb_dtype).itemsize
    align = max(8, 32 // itemsize)                  # sublane packing multiple

    E_pad = _round_up(E, 8)
    R_pad = _round_up(R, 8)
    if E_pad != E:
        ent_emb = jnp.pad(ent_emb, ((0, E_pad - E), (0, 0)))
    if R_pad != R:
        rel_emb = jnp.pad(rel_emb, ((0, R_pad - R), (0, 0)))

    resident = 2 * (E_pad + R_pad) * D * itemsize   # tables (2x, conservative)
    # 2x (tb,D) new output + 2x score + 2x 3 id blocks + one-hot intermediates
    per_row = 2 * D * itemsize + 2 * 4 + 6 * 4 + (2 * E_pad + R_pad) * 4
    if tb is None:
        tb = _pick_tb(B, per_row, resident, vmem_cap, align, max_tb=1024)
    tb = max(align, _round_up(int(tb), align))

    Bp = _round_up(B, tb)
    ntiles = Bp // tb
    pad = Bp - B
    if pad:
        obs_ids = jnp.pad(obs_ids, (0, pad))
        new_ids = jnp.pad(new_ids, (0, pad))
        rel_ids = jnp.pad(rel_ids, (0, pad))
    obs_ids = obs_ids.reshape(Bp, 1)
    new_ids = new_ids.reshape(Bp, 1)
    rel_ids = rel_ids.reshape(Bp, 1)

    vmem_limit = _vmem_limit(resident + per_row * tb, vmem_cap)

    new_embs, scores = pl.pallas_call(
        _tables_in_vmem_kernel,
        grid=(ntiles,),
        in_specs=[
            pl.BlockSpec((E_pad, D), lambda i: (0, 0)),   # whole ent table
            pl.BlockSpec((R_pad, D), lambda i: (0, 0)),   # whole rel table
            pl.BlockSpec((tb, 1), lambda i: (i, 0)),
            pl.BlockSpec((tb, 1), lambda i: (i, 0)),
            pl.BlockSpec((tb, 1), lambda i: (i, 0)),
        ],
        out_specs=(
            pl.BlockSpec((tb, D), lambda i: (i, 0)),
            pl.BlockSpec((tb, 1), lambda i: (i, 0)),
        ),
        out_shape=(
            jax.ShapeDtypeStruct((Bp, D), emb_dtype),
            jax.ShapeDtypeStruct((Bp, 1), jnp.float32),
        ),
        compiler_params=pltpu.CompilerParams(
            dimension_semantics=("parallel",),
            vmem_limit_bytes=vmem_limit,
        ),
    )(ent_emb, rel_emb, obs_ids, new_ids, rel_ids)
    return scores[:B, 0], new_embs[:B]


# ----------------------------------------------------------------------------
# Path B (large tables): fused per-row DMA gather from HBM + score
# ----------------------------------------------------------------------------
_ISSUE_UNROLL = 8


def _gather_score_kernel(
    obs_ids_ref, new_ids_ref, rel_ids_ref,       # scalar prefetch (SMEM), (Bp,) i32
    ent_hbm_ref, rel_hbm_ref,                    # embedding tables, left in HBM
    new_ref, score_ref,                          # outputs: (tb, D), (tb, 1)
    o_buf, r_buf, sem,                           # VMEM scratch + 3 DMA semaphores
):
    tb = new_ref.shape[0]
    base = pl.program_id(0) * tb

    # Issue all 3*tb row gathers for this tile.  Manually unrolled x8 so the
    # scalar id loads / address math co-issue with the descriptor pushes on
    # the single vector-misc slot (the kernel is descriptor-issue-rate bound).
    # The 'new' rows go straight into the output block (no VMEM->VMEM copy).
    @pl.loop(0, tb, step=_ISSUE_UNROLL)
    def _issue(j0):
        for u in range(_ISSUE_UNROLL):
            j = j0 + u
            oid = obs_ids_ref[base + j]
            nid = new_ids_ref[base + j]
            rid = rel_ids_ref[base + j]
            pltpu.make_async_copy(ent_hbm_ref.at[pl.ds(oid, 1), :],
                                  o_buf.at[pl.ds(j, 1), :], sem.at[0]).start()
            pltpu.make_async_copy(ent_hbm_ref.at[pl.ds(nid, 1), :],
                                  new_ref.at[pl.ds(j, 1), :], sem.at[1]).start()
            pltpu.make_async_copy(rel_hbm_ref.at[pl.ds(rid, 1), :],
                                  r_buf.at[pl.ds(j, 1), :], sem.at[2]).start()

    # One bulk wait per stream: each per-stream DMA semaphore accumulates the
    # completions of all tb row copies, so a single descriptor covering the
    # full (tb, D) destination drains the whole stream.  (The src of a
    # wait-only descriptor is irrelevant — use the destination itself so the
    # descriptor is always in-bounds regardless of table size.)
    pltpu.make_async_copy(o_buf, o_buf, sem.at[0]).wait()
    pltpu.make_async_copy(new_ref, new_ref, sem.at[1]).wait()
    pltpu.make_async_copy(r_buf, r_buf, sem.at[2]).wait()

    o = o_buf[...].astype(jnp.float32)
    n = new_ref[...].astype(jnp.float32)
    r = r_buf[...].astype(jnp.float32)
    # cal_score: sum_d obs * new * rel  (f32 accumulate, XLU lane reduce).
    score_ref[...] = jnp.sum(o * n * r, axis=1, keepdims=True)


def _score_dma_gather(ent_emb, rel_emb, obs_ids, new_ids, rel_ids, *, tb, vmem_cap):
    B = obs_ids.shape[0]
    _, D = ent_emb.shape
    emb_dtype = ent_emb.dtype
    itemsize = jnp.dtype(emb_dtype).itemsize
    align = max(8, 32 // itemsize)       # sublane packing multiple (16 bf16, 32 i8)

    # o_buf + r_buf (single-buffered scratch) + 2x (tb,D) new output + 2x score.
    per_row = 4 * D * itemsize + 2 * 4
    if tb is None:
        tb = _pick_tb(B, per_row, 0, vmem_cap, align, max_tb=2048)
    tb = max(align, _round_up(int(tb), align))
    assert tb % _ISSUE_UNROLL == 0

    Bp = _round_up(B, tb)
    ntiles = Bp // tb
    pad = Bp - B
    if pad:
        obs_ids = jnp.pad(obs_ids, (0, pad))
        new_ids = jnp.pad(new_ids, (0, pad))
        rel_ids = jnp.pad(rel_ids, (0, pad))

    # TODO(synk): the 3x (Bp,) i32 scalar-prefetch arrays live in SMEM; for
    # very large batches (B >~ 100K) the wrapper should chunk the pallas_call.

    vmem_limit = _vmem_limit(per_row * tb, vmem_cap)

    grid_spec = pltpu.PrefetchScalarGridSpec(
        num_scalar_prefetch=3,
        grid=(ntiles,),
        in_specs=[
            pl.BlockSpec(memory_space=pl.ANY),     # ent table stays in HBM
            pl.BlockSpec(memory_space=pl.ANY),     # rel table stays in HBM
        ],
        out_specs=(
            pl.BlockSpec((tb, D), lambda i, *_: (i, 0)),
            pl.BlockSpec((tb, 1), lambda i, *_: (i, 0)),
        ),
        scratch_shapes=[
            pltpu.VMEM((tb, D), emb_dtype),        # obs rows
            pltpu.VMEM((tb, D), emb_dtype),        # rel rows
            pltpu.SemaphoreType.DMA((3,)),
        ],
    )

    new_embs, scores = pl.pallas_call(
        _gather_score_kernel,
        grid_spec=grid_spec,
        out_shape=(
            jax.ShapeDtypeStruct((Bp, D), emb_dtype),
            jax.ShapeDtypeStruct((Bp, 1), jnp.float32),
        ),
        compiler_params=pltpu.CompilerParams(
            dimension_semantics=("parallel",),
            vmem_limit_bytes=vmem_limit,
        ),
    )(obs_ids, new_ids, rel_ids, ent_emb, rel_emb)
    return scores[:B, 0], new_embs[:B]


# ----------------------------------------------------------------------------
# Dispatcher
# ----------------------------------------------------------------------------
def base_out_kg_score(ent_emb, rel_emb, obs_ids, new_ids, rel_ids, *,
                      tb=None, force_dma_gather=False):
    """Fused gather + DistMult-style score.
    Returns (scores (B,) f32, new entity embeddings (B, D))."""
    assert obs_ids.shape == new_ids.shape == rel_ids.shape
    E, D = ent_emb.shape
    R, D2 = rel_emb.shape
    assert D2 == D
    assert ent_emb.dtype == rel_emb.dtype
    itemsize = jnp.dtype(ent_emb.dtype).itemsize

    obs_ids = obs_ids.astype(jnp.int32)
    new_ids = new_ids.astype(jnp.int32)
    rel_ids = rel_ids.astype(jnp.int32)

    vmem_cap = _vmem_capacity_bytes()
    E_pad = _round_up(E, 8)
    R_pad = _round_up(R, 8)
    table_bytes = 2 * (E_pad + R_pad) * D * itemsize
    use_fast = (not force_dma_gather
                and E_pad <= 1024 and R_pad <= 1024
                and table_bytes <= min(8 << 20, vmem_cap // 8))
    if use_fast:
        return _score_tables_in_vmem(ent_emb, rel_emb, obs_ids, new_ids,
                                     rel_ids, tb=tb, vmem_cap=vmem_cap)
    return _score_dma_gather(ent_emb, rel_emb, obs_ids, new_ids, rel_ids,
                             tb=tb, vmem_cap=vmem_cap)


# ----------------------------------------------------------------------------
# BaseOutKG forward (glue in plain JAX; hot path in the kernels above)
# ----------------------------------------------------------------------------
class BaseOutKGJax:
    def __init__(self, num_ents, num_rels, emb_dim, key, emb_dtype=jnp.float32):
        self.emb_dim = emb_dim
        k_e, k_r = jax.random.split(key)
        # deterministic synthetic parameters (stand-ins for nn.Embedding tables)
        self.ent_emb = (0.1 * jax.random.normal(
            k_e, (num_ents, emb_dim), dtype=jnp.float32)).astype(emb_dtype)
        self.rel_emb = (0.1 * jax.random.normal(
            k_r, (num_rels, emb_dim), dtype=jnp.float32)).astype(emb_dtype)

    def get_ent_embs(self, ent_id):
        return self.ent_emb[ent_id]

    def get_rel_embs(self, rel_id):
        return self.rel_emb[rel_id]

    def get_new_ent_embs(self, triples, deep_mask):
        # TODO(synk): abstract in the PyTorch base; realized per its call-site
        # contract — only rows with mask != 1 reach here and deep_mask in {0,2}
        # names the triple column holding the NEW entity id.
        new_ids = triples[jnp.arange(triples.shape[0]), deep_mask]
        return self.get_ent_embs(new_ids)

    @functools.partial(jax.jit, static_argnums=0)
    def forward(self, triples, mask):
        """triples: (B, 3) int32 [head_id, rel_id, tail_id]; mask: (B,) int32 in
        {0, 1, 2}:
          mask == 1 : obs = head (col 0), new = tail (col 2)
          mask == 0 : obs = tail (col 2), new = head (col 0)
          mask == 2 : obs = head (col 0), new = tail (col 2)
        (matches obs_ents_mask = 2 - deep_mask in the PyTorch code)
        """
        B = triples.shape[0]
        rows = jnp.arange(B)
        obs_col = jnp.where(mask == 1, 0, 2 - mask)
        new_col = jnp.where(mask == 1, 2, mask)
        obs_ids = triples[rows, obs_col]
        new_ids = triples[rows, new_col]
        rel_ids = triples[:, 1]
        scores, new_ent_embs = base_out_kg_score(
            self.ent_emb, self.rel_emb, obs_ids, new_ids, rel_ids)
        return scores, new_ent_embs


# ----------------------------------------------------------------------------
# Reference (pure JAX) for correctness checks
# ----------------------------------------------------------------------------
def reference_forward(model, triples, mask):
    B = triples.shape[0]
    rows = jnp.arange(B)
    obs_col = jnp.where(mask == 1, 0, 2 - mask)
    new_col = jnp.where(mask == 1, 2, mask)
    obs = model.ent_emb[triples[rows, obs_col]].astype(jnp.float32)
    new = model.ent_emb[triples[rows, new_col]]
    rel = model.rel_emb[triples[:, 1]].astype(jnp.float32)
    scores = jnp.sum(obs * new.astype(jnp.float32) * rel, axis=1)
    return scores, new


if __name__ == "__main__":
    key = jax.random.PRNGKey(0)
    k_param, k_trip, k_mask, k_direct = jax.random.split(key, 4)

    num_ents, num_rels, emb_dim, batch = 16, 4, 128, 8
    model = BaseOutKGJax(num_ents, num_rels, emb_dim, k_param)

    k_h, k_r, k_t = jax.random.split(k_trip, 3)
    heads = jax.random.randint(k_h, (batch,), 0, num_ents, dtype=jnp.int32)
    rels = jax.random.randint(k_r, (batch,), 0, num_rels, dtype=jnp.int32)
    tails = jax.random.randint(k_t, (batch,), 0, num_ents, dtype=jnp.int32)
    triples = jnp.stack([heads, rels, tails], axis=1)                   # (B, 3)
    mask = jax.random.randint(k_mask, (batch,), 0, 3, dtype=jnp.int32)  # {0,1,2}

    # Check 1: full forward (small-table fast path: tables in VMEM).
    scores, new_ent_embs = model.forward(triples, mask)
    jax.block_until_ready((scores, new_ent_embs))
    ref_scores, ref_new = reference_forward(model, triples, mask)
    assert scores.shape == (batch,)
    assert new_ent_embs.shape == (batch, emb_dim)
    assert jnp.allclose(scores, ref_scores, atol=1e-5, rtol=1e-5)
    assert jnp.allclose(new_ent_embs, ref_new, atol=1e-5, rtol=1e-5)

    # Check 2: forced DMA-gather path, multi-tile grid + batch padding.
    B2 = 20
    k_o, k_n, k_r2 = jax.random.split(k_direct, 3)
    obs_ids = jax.random.randint(k_o, (B2,), 0, num_ents, dtype=jnp.int32)
    new_ids = jax.random.randint(k_n, (B2,), 0, num_ents, dtype=jnp.int32)
    rel_ids = jax.random.randint(k_r2, (B2,), 0, num_rels, dtype=jnp.int32)
    s2, n2 = base_out_kg_score(model.ent_emb, model.rel_emb,
                               obs_ids, new_ids, rel_ids, tb=8,
                               force_dma_gather=True)
    jax.block_until_ready((s2, n2))
    ref_s2 = jnp.sum(model.ent_emb[obs_ids] * model.ent_emb[new_ids]
                     * model.rel_emb[rel_ids], axis=1)
    assert jnp.allclose(s2, ref_s2, atol=1e-5, rtol=1e-5)
    assert jnp.allclose(n2, model.ent_emb[new_ids], atol=1e-5, rtol=1e-5)

    # Check 3: fast path with a multi-tile grid (B=20 -> 2 tiles of 16).
    s3, n3 = base_out_kg_score(model.ent_emb, model.rel_emb,
                               obs_ids, new_ids, rel_ids)
    jax.block_until_ready((s3, n3))
    assert jnp.allclose(s3, ref_s2, atol=1e-5, rtol=1e-5)
    assert jnp.allclose(n3, model.ent_emb[new_ids], atol=1e-5, rtol=1e-5)

    print("KERNEL_OK")
</pallas_src>

<mosaic_0001>
module attributes {stable_mosaic.version = 11 : i64} {
  func.func @_tables_in_vmem_kernel(%arg0: i32, %arg1: memref<16x128xf32, #tpu.memory_space<vmem>>, %arg2: memref<8x128xf32, #tpu.memory_space<vmem>>, %arg3: memref<8x1xi32, #tpu.memory_space<vmem>>, %arg4: memref<8x1xi32, #tpu.memory_space<vmem>>, %arg5: memref<8x1xi32, #tpu.memory_space<vmem>>, %arg6: memref<8x128xf32, #tpu.memory_space<vmem>>, %arg7: memref<8x1xf32, #tpu.memory_space<vmem>>) attributes {dimension_semantics = [#tpu.dimension_semantics<parallel>], iteration_bounds = array<i64: 1>, scalar_prefetch = 0 : i64, scratch_operands = 0 : i64, tpu.core_type = #tpu.core_type<tc>, window_params = [{pipeline_mode = #tpu.pipeline_mode<synchronous>, transform_indices = @transform_0, window_bounds = array<i64: 16, 128>}, {pipeline_mode = #tpu.pipeline_mode<synchronous>, transform_indices = @transform_1, window_bounds = array<i64: 8, 128>}, {transform_indices = @transform_2, window_bounds = array<i64: 8, 1>}, {transform_indices = @transform_3, window_bounds = array<i64: 8, 1>}, {transform_indices = @transform_4, window_bounds = array<i64: 8, 1>}, {transform_indices = @transform_5, window_bounds = array<i64: 8, 128>}, {transform_indices = @transform_6, window_bounds = array<i64: 8, 1>}]} {
    %c0 = arith.constant 0 : index
    %c0_0 = arith.constant 0 : index
    %0 = vector.load %arg1[%c0, %c0_0] : memref<16x128xf32, #tpu.memory_space<vmem>>, vector<16x128xf32>
    %c0_1 = arith.constant 0 : index
    %c0_2 = arith.constant 0 : index
    %1 = vector.load %arg2[%c0_1, %c0_2] : memref<8x128xf32, #tpu.memory_space<vmem>>, vector<8x128xf32>
    %2 = tpu.iota {dimensions = array<i32: 1>} : vector<8x16xi32>
    %3 = tpu.iota {dimensions = array<i32: 1>} : vector<8x8xi32>
    %c0_3 = arith.constant 0 : index
    %c0_4 = arith.constant 0 : index
    %4 = vector.load %arg3[%c0_3, %c0_4] : memref<8x1xi32, #tpu.memory_space<vmem>>, vector<8x1xi32>
    %5 = vector.broadcast %4 : vector<8x1xi32> to vector<8x16xi32>
    %6 = arith.cmpi eq, %5, %2 : vector<8x16xi32>
    %7 = arith.extui %6 : vector<8x16xi1> to vector<8x16xi32>
    %8 = arith.sitofp %7 : vector<8x16xi32> to vector<8x16xf32>
    %c0_5 = arith.constant 0 : index
    %c0_6 = arith.constant 0 : index
    %9 = vector.load %arg4[%c0_5, %c0_6] : memref<8x1xi32, #tpu.memory_space<vmem>>, vector<8x1xi32>
    %10 = vector.broadcast %9 : vector<8x1xi32> to vector<8x16xi32>
    %11 = arith.cmpi eq, %10, %2 : vector<8x16xi32>
    %12 = arith.extui %11 : vector<8x16xi1> to vector<8x16xi32>
    %13 = arith.sitofp %12 : vector<8x16xi32> to vector<8x16xf32>
    %c0_7 = arith.constant 0 : index
    %c0_8 = arith.constant 0 : index
    %14 = vector.load %arg5[%c0_7, %c0_8] : memref<8x1xi32, #tpu.memory_space<vmem>>, vector<8x1xi32>
    %15 = vector.broadcast %14 : vector<8x1xi32> to vector<8x8xi32>
    %16 = arith.cmpi eq, %15, %3 : vector<8x8xi32>
    %17 = arith.extui %16 : vector<8x8xi1> to vector<8x8xi32>
    %18 = arith.sitofp %17 : vector<8x8xi32> to vector<8x8xf32>
    %cst = arith.constant dense<0.000000e+00> : vector<8x128xf32>
    %19 = tpu.matmul %8, %0, %cst {dimension_numbers = #tpu.dot_dimension_numbers<[1], [0], [0], [1], [0, 0, 1, 1], [], []>} : vector<8x16xf32>, vector<16x128xf32>, vector<8x128xf32> -> vector<8x128xf32>
    %cst_9 = arith.constant dense<0.000000e+00> : vector<8x128xf32>
    %20 = tpu.matmul %13, %0, %cst_9 {dimension_numbers = #tpu.dot_dimension_numbers<[1], [0], [0], [1], [0, 0, 1, 1], [], []>} : vector<8x16xf32>, vector<16x128xf32>, vector<8x128xf32> -> vector<8x128xf32>
    %cst_10 = arith.constant dense<0.000000e+00> : vector<8x128xf32>
    %21 = tpu.matmul %18, %1, %cst_10 {dimension_numbers = #tpu.dot_dimension_numbers<[1], [0], [0], [1], [0, 0, 1, 1], [], []>} : vector<8x8xf32>, vector<8x128xf32>, vector<8x128xf32> -> vector<8x128xf32>
    %c0_11 = arith.constant 0 : index
    %c0_12 = arith.constant 0 : index
    %22 = vector.load %arg6[%c0_11, %c0_12] : memref<8x128xf32, #tpu.memory_space<vmem>>, vector<8x128xf32>
    tpu.vector_store %arg6[%c0_11, %c0_12], %20 {strides = array<i32>} : memref<8x128xf32, #tpu.memory_space<vmem>>, vector<8x128xf32>,
    %23 = arith.mulf %19, %20 : vector<8x128xf32>
    %24 = arith.mulf %23, %21 : vector<8x128xf32>
    %cst_13 = arith.constant dense<0.000000e+00> : vector<8xf32>
    %25 = vector.multi_reduction <add>, %24, %cst_13 [1] : vector<8x128xf32> to vector<8xf32>
    %26 = vector.shape_cast %25 : vector<8xf32> to vector<8x1xf32>
    %c0_14 = arith.constant 0 : index
    %c0_15 = arith.constant 0 : index
    %27 = vector.load %arg7[%c0_14, %c0_15] : memref<8x1xf32, #tpu.memory_space<vmem>>, vector<8x1xf32>
    tpu.vector_store %arg7[%c0_14, %c0_15], %26 {strides = array<i32>} : memref<8x1xf32, #tpu.memory_space<vmem>>, vector<8x1xf32>,
    return
  }
  func.func @transform_0(%arg0: i32) -> (i32, i32) {
    %c0_i32 = arith.constant 0 : i32
    %c0_i32_0 = arith.constant 0 : i32
    %c0_i32_1 = arith.constant 0 : i32
    return %c0_i32, %c0_i32_0 : i32, i32
  }
  func.func @transform_1(%arg0: i32) -> (i32, i32) {
    %c0_i32 = arith.constant 0 : i32
    %c0_i32_0 = arith.constant 0 : i32
    %c0_i32_1 = arith.constant 0 : i32
    return %c0_i32, %c0_i32_0 : i32, i32
  }
  func.func @transform_2(%arg0: i32) -> (i32, i32) {
    %c0_i32 = arith.constant 0 : i32
    %c0_i32_0 = arith.constant 0 : i32
    return %arg0, %c0_i32 : i32, i32
  }
  func.func @transform_3(%arg0: i32) -> (i32, i32) {
    %c0_i32 = arith.constant 0 : i32
    %c0_i32_0 = arith.constant 0 : i32
    return %arg0, %c0_i32 : i32, i32
  }
  func.func @transform_4(%arg0: i32) -> (i32, i32) {
    %c0_i32 = arith.constant 0 : i32
    %c0_i32_0 = arith.constant 0 : i32
    return %arg0, %c0_i32 : i32, i32
  }
  func.func @transform_5(%arg0: i32) -> (i32, i32) {
    %c0_i32 = arith.constant 0 : i32
    %c0_i32_0 = arith.constant 0 : i32
    return %arg0, %c0_i32 : i32, i32
  }
  func.func @transform_6(%arg0: i32) -> (i32, i32) {
    %c0_i32 = arith.constant 0 : i32
    %c0_i32_0 = arith.constant 0 : i32
    return %arg0, %c0_i32 : i32, i32
  }
}

</mosaic_0001>

<llo_original>
// kernel: forward.1
$region0: #{forward.1}
  #allocation0 [shape = 'u32[]', space=smem, size = 0x4, offset = 0x4, fixed_abs, tag = 'smem constant byte address 0x4 - core index']
  #allocation1 [shape = 'u32[144,128]{1,0:T(1,128)}', space=vmem, size = 0x12000, scoped, tag = 'internal scratch']
  %s0 = inlined_call_operand.vmem [shape: f32[16,128], index: 0, kind: input, shape index: {}]
  %s1 = inlined_call_operand.vmem [shape: f32[8,128], index: 1, kind: input, shape index: {}]
  %s2 = inlined_call_operand.vmem [shape: s32[8,1], index: 2, kind: input, shape index: {}]
  %s3 = inlined_call_operand.vmem [shape: s32[8,1], index: 3, kind: input, shape index: {}]
  %s4 = inlined_call_operand.vmem [shape: s32[8,1], index: 4, kind: input, shape index: {}]
  %s5 = inlined_call_operand.hbm [shape: f32[8,128], index: 5, kind: output, shape index: {0}]
  %s6 = inlined_call_operand.vmem [shape: f32[8,1], index: 6, kind: output, shape index: {1}]
  %7 = xla_tuple %s5, %s6
  %s8 = sld [smem:[#allocation0]]
  $region38: #{forward.1} parent=0
    _
  %s10 = ssub.s32 1, %s8
  %s11 = scalar_select 0, %s10, %s8
  $region1: #{forward.1} parent=0
    #allocation2 [shape = 'u8[4096]{0}', space=vmem, size = 0x1000, scoped, tag = 'output window, operand 0, single buffered']
    #allocation3 [shape = 's32[1]{0}', space=sflag, size = 0x4, scoped, tag = 'scoped memory for forward.1']
    %12 = vsyncpa [#allocation3], 0
    // Predicated region
    $region2: #{forward.1} parent=1 // pred_check
      _
    $region3: #{forward.1} parent=1 // pred_check_branch
      %14 = sbr.rel (0) target = $region5
    $region4: #{forward.1} parent=1 // pred_region
      _
    $region5: #{forward.1} parent=1 // pred_fallthru
      _
    // Predicated region
    $region6: #{forward.1} parent=1 // pred_check
      _
    $region7: #{forward.1} parent=1 // pred_check_branch
      %16 = sbr.rel (0) target = $region9
    $region8: #{forward.1} parent=1 // pred_region
      _
    $region9: #{forward.1} parent=1 // pred_fallthru
      _
    // Predicated region
    $region10: #{forward.1} parent=1 // pred_check
      _
    $region11: #{forward.1} parent=1 // pred_check_branch
      %18 = sbr.rel (0) target = $region13
    $region12: #{forward.1} parent=1 // pred_region
      _
    $region13: #{forward.1} parent=1 // pred_fallthru
      _
    // Predicated region
    $region14: #{forward.1} parent=1 // pred_check
      _
    $region15: #{forward.1} parent=1 // pred_check_branch
      %20 = sbr.rel (0) target = $region17
    $region16: #{forward.1} parent=1 // pred_region
      _
    $region17: #{forward.1} parent=1 // pred_fallthru
      _
    // Predicated region
    $region18: #{forward.1} parent=1 // pred_check
      _
    $region19: #{forward.1} parent=1 // pred_check_branch
      %22 = sbr.rel (0) target = $region21
    $region20: #{forward.1} parent=1 // pred_region
      _
    $region21: #{forward.1} parent=1 // pred_fallthru
      _
    %v23 = vld [vmem:[%s0] sm:$0xff]
    %v24 = vld [vmem:[%s0 + $0x8] sm:$0xff]
    %v25 = vld [vmem:[%s1] sm:$0xff]
    %v26 = vlaneseq
    %v27 = vand.u32 %v26, 127
    %v28 = vld [vmem:[%s2] sm:$0xff]
    %29 = vset.pattern.permute.xlu0 0
    %30 = vperm.xlu0 %29, %v28
    %v31 = vpop.permute.xlu0 %30
    %vm32 = vcmp.eq.s32.totalorder %v31, %v27
    %v33 = vsel %vm32, 1, 0
    %v34 = vcvt.s32.f32 %v33
    %v35 = vld [vmem:[%s3] sm:$0xff]
    %36 = vset.pattern.permute.xlu0 0
    %37 = vperm.xlu0 %36, %v35
    %v38 = vpop.permute.xlu0 %37
    %vm39 = vcmp.eq.s32.totalorder %v38, %v27
    %v40 = vsel %vm39, 1, 0
    %v41 = vcvt.s32.f32 %v40
    %v42 = vld [vmem:[%s4] sm:$0xff]
    %43 = vset.pattern.permute.xlu0 0
    %44 = vperm.xlu0 %43, %v42
    %v45 = vpop.permute.xlu0 %44
    %vm46 = vcmp.eq.s32.totalorder %v45, %v27
    %v47 = vsel %vm46, 1, 0
    %v48 = vcvt.s32.f32 %v47
    %vm49 = vcmask 130048
    %v51 = vsel %vm49, %v34, 0
    %53 = vmatprep.subr.mxu0 0.0
    %54 = vmatpush1.msra.mxu0 %v23
    %55 = vmatprep.subr.mxu0 0.0
    %56 = vmatpush1.msra.mxu0 %v24
    %57 = vmatprep.subr.mxu0 0.0
    %58 = vmatpush1.msra.mxu0 0.0
    %59 = vmatprep.subr.mxu0 0.0
    %60 = vmatpush1.msra.mxu0 0.0
    %61 = vmatprep.subr.mxu0 0.0
    %62 = vmatpush1.msra.mxu0 0.0
    %63 = vmatprep.subr.mxu0 0.0
    %64 = vmatpush1.msra.mxu0 0.0
    %65 = vmatprep.subr.mxu0 0.0
    %66 = vmatpush1.msra.mxu0 0.0
    %67 = vmatprep.subr.mxu0 0.0
    %68 = vmatpush1.msra.mxu0 0.0
    %69 = vmatprep.subr.mxu0 0.0
    %70 = vmatpush1.msra.mxu0 0.0
    %71 = vmatprep.subr.mxu0 0.0
    %72 = vmatpush1.msra.mxu0 0.0
    %73 = vmatprep.subr.mxu0 0.0
    %74 = vmatpush1.msra.mxu0 0.0
    %75 = vmatprep.subr.mxu0 0.0
    %76 = vmatpush1.msra.mxu0 0.0
    %77 = vmatprep.subr.mxu0 0.0
    %78 = vmatpush1.msra.mxu0 0.0
    %79 = vmatprep.subr.mxu0 0.0
    %80 = vmatpush1.msra.mxu0 0.0
    %81 = vmatprep.subr.mxu0 0.0
    %82 = vmatpush1.msra.mxu0 0.0
    %83 = vmatprep.subr.mxu0 0.0
    %84 = vmatpush1.msra.mxu0 0.0
    %85 = vmatprep.subr.mxu0 0.0
    %86 = vmatpush1.msra.mxu0 0.0
    %87 = vmatprep.subr.mxu0 0.0
    %88 = vmatpush1.msra.mxu0 0.0
    %89 = vmatprep.subr.mxu0 0.0
    %90 = vmatpush1.msra.mxu0 0.0
    %91 = vmatprep.subr.mxu0 0.0
    %92 = vmatpush1.msra.mxu0 0.0
    %93 = vmatprep.subr.mxu0 0.0
    %94 = vmatpush1.msra.mxu0 0.0
    %95 = vmatprep.subr.mxu0 0.0
    %96 = vmatpush1.msra.mxu0 0.0
    %97 = vmatprep.subr.mxu0 0.0
    %98 = vmatpush1.msra.mxu0 0.0
    %99 = vmatprep.subr.mxu0 0.0
    %100 = vmatpush1.msra.mxu0 0.0
    %101 = vmatprep.subr.mxu0 0.0
    %102 = vmatpush1.msra.mxu0 0.0
    %103 = vmatprep.subr.mxu0 0.0
    %104 = vmatpush1.msra.mxu0 0.0
    %105 = vmatprep.subr.mxu0 0.0
    %106 = vmatpush1.msra.mxu0 0.0
    %107 = vmatprep.subr.mxu0 0.0
    %108 = vmatpush1.msra.mxu0 0.0
    %109 = vmatprep.subr.mxu0 0.0
    %110 = vmatpush1.msra.mxu0 0.0
    %111 = vmatprep.subr.mxu0 0.0
    %112 = vmatpush1.msra.mxu0 0.0
    %113 = vmatprep.subr.mxu0 0.0
    %114 = vmatpush1.msra.mxu0 0.0
    %115 = vmatprep.subr.mxu0 0.0
    %116 = vmatpush1.msra.mxu0 0.0
    %117 = vmatprep.mubr.f32.mxu0 0.0
    %118 = vmatmul.mubr.f32.gmra.mrb[0].mxu0 %v51
    %v119 = vpop.f32.mrb[0].mxu0
    %v120 = vadd.f32 0.0, %v119
    %v121 = vpop.f32.mrb[0].mxu0
    %122 = vdwg.mxu0
    %v124 = vsel %vm49, %v41, 0
    %126 = vmatprep.subr.mxu0 0.0
    %127 = vmatpush1.msra.mxu0 %v23
    %128 = vmatprep.subr.mxu0 0.0
    %129 = vmatpush1.msra.mxu0 %v24
    %130 = vmatprep.subr.mxu0 0.0
    %131 = vmatpush1.msra.mxu0 0.0
    %132 = vmatprep.subr.mxu0 0.0
    %133 = vmatpush1.msra.mxu0 0.0
    %134 = vmatprep.subr.mxu0 0.0
    %135 = vmatpush1.msra.mxu0 0.0
    %136 = vmatprep.subr.mxu0 0.0
    %137 = vmatpush1.msra.mxu0 0.0
    %138 = vmatprep.subr.mxu0 0.0
    %139 = vmatpush1.msra.mxu0 0.0
    %140 = vmatprep.subr.mxu0 0.0
    %141 = vmatpush1.msra.mxu0 0.0
    %142 = vmatprep.subr.mxu0 0.0
    %143 = vmatpush1.msra.mxu0 0.0
    %144 = vmatprep.subr.mxu0 0.0
    %145 = vmatpush1.msra.mxu0 0.0
    %146 = vmatprep.subr.mxu0 0.0
    %147 = vmatpush1.msra.mxu0 0.0
    %148 = vmatprep.subr.mxu0 0.0
    %149 = vmatpush1.msra.mxu0 0.0
    %150 = vmatprep.subr.mxu0 0.0
    %151 = vmatpush1.msra.mxu0 0.0
    %152 = vmatprep.subr.mxu0 0.0
    %153 = vmatpush1.msra.mxu0 0.0
    %154 = vmatprep.subr.mxu0 0.0
    %155 = vmatpush1.msra.mxu0 0.0
    %156 = vmatprep.subr.mxu0 0.0
    %157 = vmatpush1.msra.mxu0 0.0
    %158 = vmatprep.subr.mxu0 0.0
    %159 = vmatpush1.msra.mxu0 0.0
    %160 = vmatprep.subr.mxu0 0.0
    %161 = vmatpush1.msra.mxu0 0.0
    %162 = vmatprep.subr.mxu0 0.0
    %163 = vmatpush1.msra.mxu0 0.0
    %164 = vmatprep.subr.mxu0 0.0
    %165 = vmatpush1.msra.mxu0 0.0
    %166 = vmatprep.subr.mxu0 0.0
    %167 = vmatpush1.msra.mxu0 0.0
    %168 = vmatprep.subr.mxu0 0.0
    %169 = vmatpush1.msra.mxu0 0.0
    %170 = vmatprep.subr.mxu0 0.0
    %171 = vmatpush1.msra.mxu0 0.0
    %172 = vmatprep.subr.mxu0 0.0
    %173 = vmatpush1.msra.mxu0 0.0
    %174 = vmatprep.subr.mxu0 0.0
    %175 = vmatpush1.msra.mxu0 0.0
    %176 = vmatprep.subr.mxu0 0.0
    %177 = vmatpush1.msra.mxu0 0.0
    %178 = vmatprep.subr.mxu0 0.0
    %179 = vmatpush1.msra.mxu0 0.0
    %180 = vmatprep.subr.mxu0 0.0
    %181 = vmatpush1.msra.mxu0 0.0
    %182 = vmatprep.subr.mxu0 0.0
    %183 = vmatpush1.msra.mxu0 0.0
    %184 = vmatprep.subr.mxu0 0.0
    %185 = vmatpush1.msra.mxu0 0.0
    %186 = vmatprep.subr.mxu0 0.0
    %187 = vmatpush1.msra.mxu0 0.0
    %188 = vmatprep.subr.mxu0 0.0
    %189 = vmatpush1.msra.mxu0 0.0
    %190 = vmatprep.mubr.f32.mxu0 0.0
    %191 = vmatmul.mubr.f32.gmra.mrb[0].mxu0 %v124
    %v192 = vpop.f32.mrb[0].mxu0
    %v193 = vadd.f32 0.0, %v192
    %v194 = vpop.f32.mrb[0].mxu0
    %195 = vdwg.mxu0
    %vm196 = vcmask 64512
    %v198 = vsel %vm196, %v48, 0
    %200 = vmatprep.subr.mxu0 0.0
    %201 = vmatpush1.msra.mxu0 %v25
    %202 = vmatprep.subr.mxu0 0.0
    %203 = vmatpush1.msra.mxu0 0.0
    %204 = vmatprep.subr.mxu0 0.0
    %205 = vmatpush1.msra.mxu0 0.0
    %206 = vmatprep.subr.mxu0 0.0
    %207 = vmatpush1.msra.mxu0 0.0
    %208 = vmatprep.subr.mxu0 0.0
    %209 = vmatpush1.msra.mxu0 0.0
    %210 = vmatprep.subr.mxu0 0.0
    %211 = vmatpush1.msra.mxu0 0.0
    %212 = vmatprep.subr.mxu0 0.0
    %213 = vmatpush1.msra.mxu0 0.0
    %214 = vmatprep.subr.mxu0 0.0
    %215 = vmatpush1.msra.mxu0 0.0
    %216 = vmatprep.subr.mxu0 0.0
    %217 = vmatpush1.msra.mxu0 0.0
    %218 = vmatprep.subr.mxu0 0.0
    %219 = vmatpush1.msra.mxu0 0.0
    %220 = vmatprep.subr.mxu0 0.0
    %221 = vmatpush1.msra.mxu0 0.0
    %222 = vmatprep.subr.mxu0 0.0
    %223 = vmatpush1.msra.mxu0 0.0
    %224 = vmatprep.subr.mxu0 0.0
    %225 = vmatpush1.msra.mxu0 0.0
    %226 = vmatprep.subr.mxu0 0.0
    %227 = vmatpush1.msra.mxu0 0.0
    %228 = vmatprep.subr.mxu0 0.0
    %229 = vmatpush1.msra.mxu0 0.0
    %230 = vmatprep.subr.mxu0 0.0
    %231 = vmatpush1.msra.mxu0 0.0
    %232 = vmatprep.subr.mxu0 0.0
    %233 = vmatpush1.msra.mxu0 0.0
    %234 = vmatprep.subr.mxu0 0.0
    %235 = vmatpush1.msra.mxu0 0.0
    %236 = vmatprep.subr.mxu0 0.0
    %237 = vmatpush1.msra.mxu0 0.0
    %238 = vmatprep.subr.mxu0 0.0
    %239 = vmatpush1.msra.mxu0 0.0
    %240 = vmatprep.subr.mxu0 0.0
    %241 = vmatpush1.msra.mxu0 0.0
    %242 = vmatprep.subr.mxu0 0.0
    %243 = vmatpush1.msra.mxu0 0.0
    %244 = vmatprep.subr.mxu0 0.0
    %245 = vmatpush1.msra.mxu0 0.0
    %246 = vmatprep.subr.mxu0 0.0
    %247 = vmatpush1.msra.mxu0 0.0
    %248 = vmatprep.subr.mxu0 0.0
    %249 = vmatpush1.msra.mxu0 0.0
    %250 = vmatprep.subr.mxu0 0.0
    %251 = vmatpush1.msra.mxu0 0.0
    %252 = vmatprep.subr.mxu0 0.0
    %253 = vmatpush1.msra.mxu0 0.0
    %254 = vmatprep.subr.mxu0 0.0
    %255 = vmatpush1.msra.mxu0 0.0
    %256 = vmatprep.subr.mxu0 0.0
    %257 = vmatpush1.msra.mxu0 0.0
    %258 = vmatprep.subr.mxu0 0.0
    %259 = vmatpush1.msra.mxu0 0.0
    %260 = vmatprep.subr.mxu0 0.0
    %261 = vmatpush1.msra.mxu0 0.0
    %262 = vmatprep.subr.mxu0 0.0
    %263 = vmatpush1.msra.mxu0 0.0
    %264 = vmatprep.mubr.f32.mxu0 0.0
    %265 = vmatmul.mubr.f32.gmra.mrb[0].mxu0 %v198
    %v266 = vpop.f32.mrb[0].mxu0
    %v267 = vadd.f32 0.0, %v266
    %v268 = vpop.f32.mrb[0].mxu0
    %269 = vdwg.mxu0
    %270 = vst [vmem:[#allocation2] sm:$0xff] %v193
    %v271 = vmul.f32 %v120, %v193
    %v272 = vmul.f32 %v271, %v267
    %273 = vadd.xlane.f32.xlu0 %v272
    %v274 = vpop.xlane.xlu0 %273
    %vm275 = vcmask 7168
    %276 = vst.msk [vmem:[%s6] sm:$0xff] %vm275, %v274
    // Predicated region
    $region22: #{forward.1} parent=1 // pred_check
      _
    $region23: #{forward.1} parent=1 // pred_check_branch
      %278 = sbr.rel (0) target = $region25
    $region24: #{forward.1} parent=1 // pred_region
      %s280 = ssub.s32 128, 128
      %281 = vsyncadd [#allocation3], %s280
      %s283 = sshll.u32 [#allocation2], 4
      %s284 = int_to_ptr.vmem [resolvable:$true] %s283
      %286 = dma.vmem_to_hbm [thread:$0]  %s284, 128, %s5, [#allocation3]
    $region25: #{forward.1} parent=1 // pred_fallthru
      _
    // Predicated region
    $region26: #{forward.1} parent=1 // pred_check
      _
    $region27: #{forward.1} parent=1 // pred_check_branch
      %288 = sbr.rel (0) target = $region29
    $region28: #{forward.1} parent=1 // pred_region
      _
    $region29: #{forward.1} parent=1 // pred_fallthru
      _
    // Predicated region
    $region30: #{forward.1} parent=1 // pred_check
      _
    $region31: #{forward.1} parent=1 // pred_check_branch
      %290 = sbr.rel (0) target = $region33
    $region32: #{forward.1} parent=1 // pred_region
      %291 = dma.done [#allocation3], 128
    $region33: #{forward.1} parent=1 // pred_fallthru
      _
    // Predicated region
    $region34: #{forward.1} parent=1 // pred_check
      _
    $region35: #{forward.1} parent=1 // pred_check_branch
      %293 = sbr.rel (0) target = $region37
    $region36: #{forward.1} parent=1 // pred_region
      _
    $region37: #{forward.1} parent=1 // pred_fallthru
      _
    %294 = vsyncpa [#allocation3], 1

</llo_original>
